<compile_context>
chip_gen: v6e
topology: v6e:2x2x1
jax: 0.10.0
libtpu: 0.0.40
codegen_flags: <defaults>
</compile_context>

<pallas_src>
import math
import functools

import jax
import jax.numpy as jnp
from jax import lax
from jax.experimental import pallas as pl
from jax.experimental.pallas import tpu as pltpu

_LANE = 128


def _round_up(x, m):
    return (x + m - 1) // m * m


def _device_kind():
    try:
        return jax.devices()[0].device_kind.lower()
    except Exception:
        return ""


def _vmem_limit_bytes(kind):
    if "v7" in kind or "7x" in kind:
        return 48 * 1024 * 1024          # v7x: 64 MiB physical VMEM per core
    if "v6" in kind or "v5" in kind:
        return 100 * 1024 * 1024         # v5e / v6e: 128 MiB physical VMEM
    return None                          # unknown generation: keep defaults


def _pick_row_tile(H, x_row_bytes, out_row_bytes, extra_row_bytes, fixed_bytes,
                   budget, halo_rows):
    """Largest divisor TH of H whose double-buffered working set fits `budget`."""
    for th in range(H, 0, -1):
        if H % th:
            continue
        need = (2 * (th + halo_rows) * x_row_bytes   # double-buffered input tile
                + 2 * th * out_row_bytes             # double-buffered output tile
                + th * extra_row_bytes               # in-kernel f32 temporaries
                + fixed_bytes)                       # weights (x2) + misc
        if need <= budget:
            return th
    return 1


# --------------------------------------------------------------------------
# Kernels
# --------------------------------------------------------------------------
def _cba_kernel_unfold(x_ref, w_ref, sb_ref, o_ref, *, TH, W, KC, TC, K):
    # x_ref : (1, TH+K-1, W, K*Cin) bf16  kw-unfolded rows (with H halo)
    # w_ref : (K, K*Cin, TC)        bf16  kh-indexed, kw folded into contraction
    # sb_ref: (2, TC)               f32   folded BN scale / bias
    # o_ref : (1, TH, W, TC)
    xp = x_ref[0]                                         # (TH+K-1, W, KC)
    acc = jnp.zeros((TH * W, TC), dtype=jnp.float32)
    for kh in range(K):                                   # K deep MXU matmuls
        rows = xp[kh:kh + TH]                             # leading-dim slice
        acc += jnp.dot(rows.reshape(TH * W, KC), w_ref[kh],
                       preferred_element_type=jnp.float32)
    y = acc * sb_ref[0] + sb_ref[1]                       # fused inference BN
    y = 0.5 * y * (1.0 + lax.erf(y * (1.0 / math.sqrt(2.0))))   # exact GELU
    o_ref[0] = y.reshape(TH, W, TC).astype(o_ref.dtype)


def _cba_kernel_direct(x_ref, w_ref, sb_ref, o_ref, *, TH, W, Wr, Cin, TC, K):
    # x_ref : (1, TH+K-1, Wr, Cin)  bf16  plain NHWC rows, W halo padded to Wr (mult of 8)
    # w_ref : (K, K, Cin, TC)       bf16
    # sb_ref: (2, TC)               f32
    # o_ref : (1, TH, W, TC)
    xp = x_ref[0]                                         # (TH+K-1, Wr, Cin)
    # Hoist the K kh-shifted row slabs (leading-dim slices; reshape is free
    # because Wr is a multiple of 8).
    rows = [xp[kh:kh + TH].reshape(TH * Wr, Cin) for kh in range(K)]
    acc = jnp.zeros((TH, W, TC), dtype=jnp.float32)
    for kw in range(K):
        z = jnp.zeros((TH * Wr, TC), dtype=jnp.float32)
        for kh in range(K):
            z += jnp.dot(rows[kh], w_ref[kh, kw],
                         preferred_element_type=jnp.float32)
        # kw shift applied on the f32 partial sums (unpacked sublane slice).
        acc += z.reshape(TH, Wr, TC)[:, kw:kw + W, :]
    y = acc * sb_ref[0] + sb_ref[1]                       # fused inference BN
    y = 0.5 * y * (1.0 + lax.erf(y * (1.0 / math.sqrt(2.0))))   # exact GELU
    o_ref[0] = y.astype(o_ref.dtype)


# --------------------------------------------------------------------------
# Wrapper
# --------------------------------------------------------------------------
def cba_forward(x_nchw, weight_oihw, gamma, beta, running_mean, running_var,
                eps=1e-5, out_dtype=None, unfold_kw=None):
    """CBA forward (k=3, s=1, p=1, g=1, d=1, bn=True, bn_first=False, act=True).

    NCHW in / NCHW out (PyTorch layout).  BatchNorm uses running statistics
    (inference mode) folded into a per-channel scale/bias."""
    B, Cin, H, W = x_nchw.shape
    Cout, Cin_w, K, K2 = weight_oihw.shape
    assert Cin == Cin_w and K == K2 == 3, "only the module defaults (k=3) are supported"
    P = (K - 1) // 2
    out_dtype = x_nchw.dtype if out_dtype is None else out_dtype
    out_bytes = jnp.dtype(out_dtype).itemsize

    kind = _device_kind()
    vmem_limit = _vmem_limit_bytes(kind)
    budget = int(0.5 * (vmem_limit if vmem_limit is not None else 24 * 1024 * 1024))

    # ---- output-channel tiling: keep weights VMEM-resident when they fit ----
    w_bytes_full = K * K * Cin * Cout * 2                           # bf16
    if w_bytes_full <= 6 * 1024 * 1024:
        # Whole weight stays resident: constant block index -> DMA'd once.
        Cout_p = Cout if (Cout % _LANE == 0 or Cout < _LANE) else _round_up(Cout, _LANE)
        TC, n_c = Cout_p, 1
    else:
        prefer256 = ("v6" in kind) or ("v7" in kind) or ("7x" in kind)
        TC = 256 if (prefer256 and Cout >= 256) else 128
        Cout_p = _round_up(Cout, TC)
        n_c = Cout_p // TC

    # ---- fold BatchNorm (inference) into one (2, Cout_p) scale/bias array ---
    inv_std = 1.0 / jnp.sqrt(running_var.astype(jnp.float32) + eps)
    scale = gamma.astype(jnp.float32) * inv_std
    bias = beta.astype(jnp.float32) - running_mean.astype(jnp.float32) * scale
    sb = jnp.zeros((2, Cout_p), jnp.float32)
    sb = sb.at[0, :Cout].set(scale)
    sb = sb.at[1, :Cout].set(bias)

    x_nhwc = jnp.transpose(x_nchw, (0, 2, 3, 1)).astype(jnp.bfloat16)
    w_hwio = jnp.transpose(weight_oihw, (2, 3, 1, 0)).astype(jnp.bfloat16)  # (kh,kw,Cin,Cout)
    if Cout_p != Cout:
        w_hwio = jnp.pad(w_hwio, ((0, 0), (0, 0), (0, 0), (0, Cout_p - Cout)))

    if unfold_kw is None:
        # Small Cin: deepen the MXU contraction via an HBM kw-unfold (3x input
        # bytes but 3x fewer / 3x deeper matmuls).  Large Cin: plain NHWC.
        unfold_kw = Cin < (128 if "v5" in kind else 256)

    if unfold_kw:
        # (B, H+2P, W, K*Cin): x_in[..., kw*Cin + c] = x_pad[:, h, w+kw, c]
        x_pad = jnp.pad(x_nhwc, ((0, 0), (P, P), (P, P), (0, 0)))
        x_in = jnp.concatenate([x_pad[:, :, kw:kw + W, :] for kw in range(K)], axis=-1)
        Wb, KC = W, K * Cin
        w_in = w_hwio.reshape(K, K * Cin, Cout_p)           # kw folded into contraction
        w_spec = pl.BlockSpec((K, K * Cin, TC), lambda c, i: (0, 0, c))
        w_tile_bytes = K * K * Cin * TC * 2
        extra_row_bytes = W * TC * 4 + Wb * KC * 2           # f32 acc + sliced rows
        kernel_fn = _cba_kernel_unfold
        kargs = dict(W=W, KC=KC, TC=TC, K=K)
    else:
        Wr = _round_up(W + 2 * P, 8)                         # sublane-aligned W halo
        x_in = jnp.pad(x_nhwc, ((0, 0), (P, P), (P, Wr - W - P), (0, 0)))
        Wb, KC = Wr, Cin
        w_in = w_hwio                                        # (K, K, Cin, Cout_p)
        w_spec = pl.BlockSpec((K, K, Cin, TC), lambda c, i: (0, 0, 0, c))
        w_tile_bytes = K * K * Cin * TC * 2
        extra_row_bytes = (W * TC * 4 + Wr * TC * 4          # f32 acc + per-kw partials
                           + K * Wr * Cin * 2)               # hoisted kh row slabs
        kernel_fn = _cba_kernel_direct
        kargs = dict(W=W, Wr=Wr, Cin=Cin, TC=TC, K=K)

    # ---- row tiling sized against the VMEM budget ---------------------------
    x_row_bytes = Wb * KC * 2
    out_row_bytes = W * TC * out_bytes
    fixed_bytes = 2 * w_tile_bytes + 8 * Cout_p + (1 << 20)  # weights (x2) + sb + slack
    TH = _pick_row_tile(H, x_row_bytes, out_row_bytes, extra_row_bytes,
                        fixed_bytes, budget, halo_rows=2 * P)
    n_h = H // TH

    if n_h == 1:
        x_tiles, BT = x_in, B                                # no extra HBM copy
    else:
        # TODO(synk): replace this HBM halo re-pad with element-indexed
        # BlockSpecs or a manual DMA so the overlapping (TH+2P)-row windows are
        # read in place; at large TH the duplicated bytes are < 2/TH of input.
        x_tiles = jnp.stack(
            [x_in[:, t * TH: t * TH + TH + 2 * P] for t in range(n_h)], axis=1
        ).reshape(B * n_h, TH + 2 * P, Wb, KC)
        BT = B * n_h

    kernel = functools.partial(kernel_fn, TH=TH, **kargs)

    cp = dict(dimension_semantics=("parallel", "parallel"))
    if vmem_limit is not None:
        cp["vmem_limit_bytes"] = vmem_limit

    out_tiles = pl.pallas_call(
        kernel,
        out_shape=jax.ShapeDtypeStruct((BT, TH, W, Cout_p), out_dtype),
        grid_spec=pltpu.PrefetchScalarGridSpec(
            num_scalar_prefetch=0,
            grid=(n_c, BT),                 # Cout-tile axis outer: weight tile
                                            # index constant across the inner sweep
            in_specs=[
                pl.BlockSpec((1, TH + 2 * P, Wb, KC), lambda c, i: (i, 0, 0, 0)),
                w_spec,
                pl.BlockSpec((2, TC), lambda c, i: (0, c)),
            ],
            out_specs=pl.BlockSpec((1, TH, W, TC), lambda c, i: (i, 0, 0, c)),
        ),
        compiler_params=pltpu.CompilerParams(**cp),
    )(x_tiles, w_in, sb)

    out = out_tiles.reshape(B, H, W, Cout_p)
    if Cout_p != Cout:
        out = out[..., :Cout]                               # drop channel padding
    # TODO(synk): downstream consumers that accept NHWC can skip this transpose.
    return jnp.transpose(out, (0, 3, 1, 2))


# --------------------------------------------------------------------------
# Reference + self-test
# --------------------------------------------------------------------------
def _reference(x_nchw, weight_oihw, gamma, beta, running_mean, running_var,
               eps=1e-5):
    """Pure-JAX f32 reference (conv -> BN(inference) -> exact GELU), NCHW."""
    y = lax.conv_general_dilated(
        x_nchw.astype(jnp.float32), weight_oihw.astype(jnp.float32),
        window_strides=(1, 1), padding=((1, 1), (1, 1)),
        dimension_numbers=("NCHW", "OIHW", "NCHW"))
    inv_std = 1.0 / jnp.sqrt(running_var + eps)
    scale = (gamma * inv_std).reshape(1, -1, 1, 1)
    bias = (beta - running_mean * gamma * inv_std).reshape(1, -1, 1, 1)
    y = y * scale + bias
    return 0.5 * y * (1.0 + lax.erf(y / math.sqrt(2.0)))


def _run_case(key, B, Cin, Cout, H, W, out_dtype=None, unfold_kw=None,
              tol=(8e-2, 2e-2)):
    K = 3
    k_x, k_w, k_g, k_b, k_m, k_v = jax.random.split(key, 6)
    x = jax.random.normal(k_x, (B, Cin, H, W), dtype=jnp.float32)
    fan_in = Cin * K * K
    w = jax.random.normal(k_w, (Cout, Cin, K, K), dtype=jnp.float32) / math.sqrt(fan_in)
    gamma = 1.0 + 0.1 * jax.random.normal(k_g, (Cout,), dtype=jnp.float32)
    beta = 0.1 * jax.random.normal(k_b, (Cout,), dtype=jnp.float32)
    rm = 0.1 * jax.random.normal(k_m, (Cout,), dtype=jnp.float32)
    rv = 1.0 + 0.1 * jax.random.uniform(k_v, (Cout,), dtype=jnp.float32)

    fwd = jax.jit(functools.partial(cba_forward, out_dtype=out_dtype,
                                    unfold_kw=unfold_kw))
    out = jax.block_until_ready(fwd(x, w, gamma, beta, rm, rv))
    ref = _reference(x, w, gamma, beta, rm, rv)

    assert out.shape == (B, Cout, H, W)
    diff = out.astype(jnp.float32) - ref
    max_err = float(jnp.max(jnp.abs(diff)))
    rel_err = float(jnp.linalg.norm(diff) / jnp.linalg.norm(ref))
    assert max_err < tol[0] and rel_err < tol[1], (max_err, rel_err)


if __name__ == "__main__":
    key = jax.random.PRNGKey(0)
    k1, k2 = jax.random.split(key)

    # Module-default small config (kw-unfold path, f32 output, weights resident).
    _run_case(k1, B=2, Cin=4, Cout=8, H=16, W=16)

    # Larger-Cin config exercising the direct NHWC path + bf16 output.
    _run_case(k2, B=2, Cin=128, Cout=128, H=16, W=16,
              out_dtype=jnp.bfloat16, unfold_kw=False, tol=(2e-1, 4e-2))

    print("KERNEL_OK")
</pallas_src>

<mosaic_0001>
module attributes {stable_mosaic.version = 11 : i64} {
  func.func @_cba_kernel_unfold(%arg0: i32, %arg1: i32, %arg2: memref<1x18x16x12xbf16, #tpu.memory_space<vmem>>, %arg3: memref<3x12x8xbf16, #tpu.memory_space<vmem>>, %arg4: memref<2x8xf32, #tpu.memory_space<vmem>>, %arg5: memref<1x16x16x8xf32, #tpu.memory_space<vmem>>) attributes {dimension_semantics = [#tpu.dimension_semantics<parallel>, #tpu.dimension_semantics<parallel>], iteration_bounds = array<i64: 1, 2>, scalar_prefetch = 0 : i64, scratch_operands = 0 : i64, tpu.core_type = #tpu.core_type<tc>, window_params = [{transform_indices = @transform_0, window_bounds = array<i64: 1, 18, 16, 12>}, {transform_indices = @transform_1, window_bounds = array<i64: 3, 12, 8>}, {transform_indices = @transform_2, window_bounds = array<i64: 2, 8>}, {transform_indices = @transform_3, window_bounds = array<i64: 1, 16, 16, 8>}]} {
    %c0 = arith.constant 0 : index
    %c0_0 = arith.constant 0 : index
    %c0_1 = arith.constant 0 : index
    %c0_2 = arith.constant 0 : index
    %0 = vector.load %arg2[%c0, %c0_0, %c0_1, %c0_2] : memref<1x18x16x12xbf16, #tpu.memory_space<vmem>>, vector<1x18x16x12xbf16>
    %1 = vector.shape_cast %0 : vector<1x18x16x12xbf16> to vector<18x16x12xbf16>
    %cst = arith.constant 0.000000e+00 : f32
    %2 = vector.broadcast %cst : f32 to vector<256x8xf32>
    %3 = vector.extract_strided_slice %1 {offsets = [0, 0, 0], sizes = [16, 16, 12], strides = [1, 1, 1]} : vector<18x16x12xbf16> to vector<16x16x12xbf16>
    %4 = vector.shape_cast %3 : vector<16x16x12xbf16> to vector<256x12xbf16>
    %c0_3 = arith.constant 0 : index
    %c0_4 = arith.constant 0 : index
    %c0_5 = arith.constant 0 : index
    %5 = vector.load %arg3[%c0_3, %c0_4, %c0_5] : memref<3x12x8xbf16, #tpu.memory_space<vmem>>, vector<1x12x8xbf16>
    %6 = vector.shape_cast %5 : vector<1x12x8xbf16> to vector<12x8xbf16>
    %cst_6 = arith.constant dense<0.000000e+00> : vector<256x8xf32>
    %7 = tpu.matmul %4, %6, %cst_6 {dimension_numbers = #tpu.dot_dimension_numbers<[1], [0], [0], [1], [0, 0, 1, 1], [], []>} : vector<256x12xbf16>, vector<12x8xbf16>, vector<256x8xf32> -> vector<256x8xf32>
    %8 = arith.addf %2, %7 : vector<256x8xf32>
    %9 = vector.extract_strided_slice %1 {offsets = [1, 0, 0], sizes = [16, 16, 12], strides = [1, 1, 1]} : vector<18x16x12xbf16> to vector<16x16x12xbf16>
    %10 = vector.shape_cast %9 : vector<16x16x12xbf16> to vector<256x12xbf16>
    %c1 = arith.constant 1 : index
    %c0_7 = arith.constant 0 : index
    %c0_8 = arith.constant 0 : index
    %11 = vector.load %arg3[%c1, %c0_7, %c0_8] : memref<3x12x8xbf16, #tpu.memory_space<vmem>>, vector<1x12x8xbf16>
    %12 = vector.shape_cast %11 : vector<1x12x8xbf16> to vector<12x8xbf16>
    %cst_9 = arith.constant dense<0.000000e+00> : vector<256x8xf32>
    %13 = tpu.matmul %10, %12, %cst_9 {dimension_numbers = #tpu.dot_dimension_numbers<[1], [0], [0], [1], [0, 0, 1, 1], [], []>} : vector<256x12xbf16>, vector<12x8xbf16>, vector<256x8xf32> -> vector<256x8xf32>
    %14 = arith.addf %8, %13 : vector<256x8xf32>
    %15 = vector.extract_strided_slice %1 {offsets = [2, 0, 0], sizes = [16, 16, 12], strides = [1, 1, 1]} : vector<18x16x12xbf16> to vector<16x16x12xbf16>
    %16 = vector.shape_cast %15 : vector<16x16x12xbf16> to vector<256x12xbf16>
    %c2 = arith.constant 2 : index
    %c0_10 = arith.constant 0 : index
    %c0_11 = arith.constant 0 : index
    %17 = vector.load %arg3[%c2, %c0_10, %c0_11] : memref<3x12x8xbf16, #tpu.memory_space<vmem>>, vector<1x12x8xbf16>
    %18 = vector.shape_cast %17 : vector<1x12x8xbf16> to vector<12x8xbf16>
    %cst_12 = arith.constant dense<0.000000e+00> : vector<256x8xf32>
    %19 = tpu.matmul %16, %18, %cst_12 {dimension_numbers = #tpu.dot_dimension_numbers<[1], [0], [0], [1], [0, 0, 1, 1], [], []>} : vector<256x12xbf16>, vector<12x8xbf16>, vector<256x8xf32> -> vector<256x8xf32>
    %20 = arith.addf %14, %19 : vector<256x8xf32>
    %c0_13 = arith.constant 0 : index
    %c0_14 = arith.constant 0 : index
    %21 = vector.load %arg4[%c0_13, %c0_14] : memref<2x8xf32, #tpu.memory_space<vmem>>, vector<1x8xf32>
    %22 = vector.shape_cast %21 : vector<1x8xf32> to vector<8xf32>
    %23 = vector.shape_cast %22 : vector<8xf32> to vector<1x8xf32>
    %24 = vector.broadcast %23 : vector<1x8xf32> to vector<256x8xf32>
    %25 = arith.mulf %20, %24 : vector<256x8xf32>
    %c1_15 = arith.constant 1 : index
    %c0_16 = arith.constant 0 : index
    %26 = vector.load %arg4[%c1_15, %c0_16] : memref<2x8xf32, #tpu.memory_space<vmem>>, vector<1x8xf32>
    %27 = vector.shape_cast %26 : vector<1x8xf32> to vector<8xf32>
    %28 = vector.shape_cast %27 : vector<8xf32> to vector<1x8xf32>
    %29 = vector.broadcast %28 : vector<1x8xf32> to vector<256x8xf32>
    %30 = arith.addf %25, %29 : vector<256x8xf32>
    %cst_17 = arith.constant 5.000000e-01 : f32
    %31 = vector.broadcast %cst_17 : f32 to vector<256x8xf32>
    %32 = arith.mulf %31, %30 : vector<256x8xf32>
    %cst_18 = arith.constant 0.707106769 : f32
    %33 = vector.broadcast %cst_18 : f32 to vector<256x8xf32>
    %34 = arith.mulf %30, %33 : vector<256x8xf32>
    %35 = math.erf %34 : vector<256x8xf32>
    %cst_19 = arith.constant 1.000000e+00 : f32
    %36 = vector.broadcast %cst_19 : f32 to vector<256x8xf32>
    %37 = arith.addf %36, %35 : vector<256x8xf32>
    %38 = arith.mulf %32, %37 : vector<256x8xf32>
    %39 = vector.shape_cast %38 : vector<256x8xf32> to vector<16x16x8xf32>
    %c0_20 = arith.constant 0 : index
    %c0_21 = arith.constant 0 : index
    %c0_22 = arith.constant 0 : index
    %c0_23 = arith.constant 0 : index
    %40 = vector.load %arg5[%c0_20, %c0_21, %c0_22, %c0_23] : memref<1x16x16x8xf32, #tpu.memory_space<vmem>>, vector<1x16x16x8xf32>
    %41 = vector.shape_cast %40 : vector<1x16x16x8xf32> to vector<16x16x8xf32>
    %42 = vector.shape_cast %39 : vector<16x16x8xf32> to vector<1x16x16x8xf32>
    tpu.vector_store %arg5[%c0_20, %c0_21, %c0_22, %c0_23], %42 {strides = array<i32>} : memref<1x16x16x8xf32, #tpu.memory_space<vmem>>, vector<1x16x16x8xf32>,
    return
  }
  func.func @transform_0(%arg0: i32, %arg1: i32) -> (i32, i32, i32, i32) {
    %c0_i32 = arith.constant 0 : i32
    %c0_i32_0 = arith.constant 0 : i32
    %c0_i32_1 = arith.constant 0 : i32
    %c0_i32_2 = arith.constant 0 : i32
    return %arg1, %c0_i32, %c0_i32_0, %c0_i32_1 : i32, i32, i32, i32
  }
  func.func @transform_1(%arg0: i32, %arg1: i32) -> (i32, i32, i32) {
    %c0_i32 = arith.constant 0 : i32
    %c0_i32_0 = arith.constant 0 : i32
    %c0_i32_1 = arith.constant 0 : i32
    return %c0_i32, %c0_i32_0, %arg0 : i32, i32, i32
  }
  func.func @transform_2(%arg0: i32, %arg1: i32) -> (i32, i32) {
    %c0_i32 = arith.constant 0 : i32
    %c0_i32_0 = arith.constant 0 : i32
    return %c0_i32, %arg0 : i32, i32
  }
  func.func @transform_3(%arg0: i32, %arg1: i32) -> (i32, i32, i32, i32) {
    %c0_i32 = arith.constant 0 : i32
    %c0_i32_0 = arith.constant 0 : i32
    %c0_i32_1 = arith.constant 0 : i32
    return %arg1, %c0_i32, %c0_i32_0, %arg0 : i32, i32, i32, i32
  }
}

</mosaic_0001>

<llo_original>
// kernel: cba_forward.1
$region0: #{cba_forward.1}
  #allocation0 [shape = 'u32[]', space=smem, size = 0x4, offset = 0x4, fixed_abs, tag = 'smem constant byte address 0x4 - core index']
  #allocation1 [shape = 'u32[144,128]{1,0:T(1,128)}', space=vmem, size = 0x12000, scoped, tag = 'internal scratch']
  %s0 = inlined_call_operand.vmem [shape: bf16[2,18,16,12], index: 0, kind: input, shape index: {}]
  %s1 = inlined_call_operand.vmem [shape: bf16[3,12,8], index: 1, kind: input, shape index: {}]
  %s2 = inlined_call_operand.vmem [shape: f32[2,8], index: 2, kind: input, shape index: {}]
  %s3 = inlined_call_operand.vmem [shape: f32[2,16,16,8], index: 3, kind: output, shape index: {}]
  %s4 = sld [smem:[#allocation0]]
  $region45: #{cba_forward.1} parent=0
    _
  %s6 = ssub.s32 1, %s4
  %s7 = scalar_select 0, %s6, %s4
  loop: start=0, step=1, limit=4
  $region2: #{cba_forward.1} parent=0 // loop_pre_header
    _
  $region3: #{cba_forward.1} parent=0 // loop_header
    %s9 = sphi 0, %s13
    %p10 = scmp.ge.s32.totalorder %s9, 4
    %s16 = sphi 0, %s28
    %s17 = sphi 0, %s24
    %s18 = sphi 0, %s16
    %s19 = sphi 0, %s17
    %s20 = sphi 0, %s18
    %s21 = sphi 0, %s19
    %s31 = sphi 0, %s33
    %s34 = sphi 0, %s31
    %s35 = sphi 0, %s34
    %s51 = sphi 0, %s35
    %s57 = sphi 0, %s59
    %s60 = sphi 0, %s57
    %s61 = sphi 0, %s60
    %s77 = sphi 0, %s61
    %s83 = sphi 0, %s85
    %s86 = sphi 0, %s83
    %s87 = sphi 0, %s86
    %s103 = sphi 0, %s87
    %s111 = sphi 0, %s113
    %s114 = sphi 0, %s111
    %s115 = sphi 0, %s114
    %s131 = sphi 0, %s115
  $region4: #{cba_forward.1} parent=0 // loop_header_branch
    %12 = sbr.rel (%p10) target = $region8
  $region5: #{cba_forward.1} parent=0 // loop_body
    %s14 = ssub.s32 %s9, 1
    %s15 = ssub.s32 %s9, 2
    %s22 = sadd.s32 1, %s17
    %p23 = scmp.ge.s32.totalorder %s22, 2
    %s24 = scalar_select %p23, 0, %s22
    %s25 = sadd.s32 1, %s16
    %s26 = scalar_select %p23, %s25, %s16
    %p27 = scmp.ge.s32.totalorder %s26, 1
    %s28 = scalar_select %p27, 0, %s26
    %s29 = ssub.s32 %s17, %s24
    %p30 = scmp.eq.s32.totalorder %s29, 0
    %s32 = sadd.s32 %s31, 1
    %s33 = scalar_select %p30, %s31, %s32
    %p36 = pneg %p30
    %p37 = scmp.eq.s32.totalorder %s9, 1
    %p38 = por %p36, %p37
    %p39 = scmp.ne.s32.totalorder %s31, %s34
    %p40 = scmp.eq.s32.totalorder %s9, 0
    %p41 = por %p39, %p40
    %p42 = scmp.ne.s32.totalorder %s31, %s34
    %p43 = scmp.eq.s32.totalorder %s14, 1
    %p44 = por %p42, %p43
    %p45 = scmp.ne.s32.totalorder %s34, %s35
    %p46 = scmp.eq.s32.totalorder %s14, 0
    %p47 = por %p45, %p46
    %p48 = scmp.ne.s32.totalorder %s34, %s35
    %p49 = scmp.eq.s32.totalorder %s15, 1
    %p50 = por %p48, %p49
    %p52 = scmp.ne.s32.totalorder %s35, %s51
    %p53 = scmp.eq.s32.totalorder %s15, 0
    %p54 = por %p52, %p53
    %s55 = ssub.s32 %s16, %s28
    %p56 = scmp.eq.s32.totalorder %s55, 0
    %s58 = sadd.s32 %s57, 1
    %s59 = scalar_select %p56, %s57, %s58
    %p62 = pneg %p56
    %p63 = scmp.eq.s32.totalorder %s9, 1
    %p64 = por %p62, %p63
    %p65 = scmp.ne.s32.totalorder %s57, %s60
    %p66 = scmp.eq.s32.totalorder %s9, 0
    %p67 = por %p65, %p66
    %p68 = scmp.ne.s32.totalorder %s57, %s60
    %p69 = scmp.eq.s32.totalorder %s14, 1
    %p70 = por %p68, %p69
    %p71 = scmp.ne.s32.totalorder %s60, %s61
    %p72 = scmp.eq.s32.totalorder %s14, 0
    %p73 = por %p71, %p72
    %p74 = scmp.ne.s32.totalorder %s60, %s61
    %p75 = scmp.eq.s32.totalorder %s15, 1
    %p76 = por %p74, %p75
    %p78 = scmp.ne.s32.totalorder %s61, %s77
    %p79 = scmp.eq.s32.totalorder %s15, 0
    %p80 = por %p78, %p79
    %s81 = ssub.s32 %s16, %s28
    %p82 = scmp.eq.s32.totalorder %s81, 0
    %s84 = sadd.s32 %s83, 1
    %s85 = scalar_select %p82, %s83, %s84
    %p88 = pneg %p82
    %p89 = scmp.eq.s32.totalorder %s9, 1
    %p90 = por %p88, %p89
    %p91 = scmp.ne.s32.totalorder %s83, %s86
    %p92 = scmp.eq.s32.totalorder %s9, 0
    %p93 = por %p91, %p92
    %p94 = scmp.ne.s32.totalorder %s83, %s86
    %p95 = scmp.eq.s32.totalorder %s14, 1
    %p96 = por %p94, %p95
    %p97 = scmp.ne.s32.totalorder %s86, %s87
    %p98 = scmp.eq.s32.totalorder %s14, 0
    %p99 = por %p97, %p98
    %p100 = scmp.ne.s32.totalorder %s86, %s87
    %p101 = scmp.eq.s32.totalorder %s15, 1
    %p102 = por %p100, %p101
    %p104 = scmp.ne.s32.totalorder %s87, %s103
    %p105 = scmp.eq.s32.totalorder %s15, 0
    %p106 = por %p104, %p105
    %s107 = ssub.s32 %s17, %s24
    %s108 = ssub.s32 %s16, %s28
    %s109 = sor.u32 %s107, %s108
    %p110 = scmp.eq.s32.totalorder %s109, 0
    %s112 = sadd.s32 %s111, 1
    %s113 = scalar_select %p110, %s111, %s112
    %p116 = pneg %p110
    %p117 = scmp.eq.s32.totalorder %s9, 1
    %p118 = por %p116, %p117
    %p119 = scmp.ne.s32.totalorder %s111, %s114
    %p120 = scmp.eq.s32.totalorder %s9, 0
    %p121 = por %p119, %p120
    %p122 = scmp.ne.s32.totalorder %s111, %s114
    %p123 = scmp.eq.s32.totalorder %s14, 1
    %p124 = por %p122, %p123
    %p125 = scmp.ne.s32.totalorder %s114, %s115
    %p126 = scmp.eq.s32.totalorder %s14, 0
    %p127 = por %p125, %p126
    %p128 = scmp.ne.s32.totalorder %s114, %s115
    %p129 = scmp.eq.s32.totalorder %s15, 1
    %p130 = por %p128, %p129
    %p132 = scmp.ne.s32.totalorder %s115, %s131
    %p133 = scmp.eq.s32.totalorder %s15, 0
    %p134 = por %p132, %p133
    %p135 = scmp.le.s32.totalorder 1, %s9
    %p136 = scmp.lt.s32.totalorder %s9, 3
    %p137 = pnand %p135, %p136
    %p138 = pneg %p137
    // Predicated region
    $region9: #{cba_forward.1} parent=5 // pred_check
      _
    $region10: #{cba_forward.1} parent=5 // pred_check_branch
      %140 = sbr.rel (%p137) target = $region12
    $region11: #{cba_forward.1} parent=5 // pred_region
      %s141 = ssub.s32 %s9, 1
      // Predicated region
      $region13: #{cba_forward.1} parent=11 // pred_check
        %p142 = pneg %p73
      $region14: #{cba_forward.1} parent=11 // pred_check_branch
        %144 = sbr.rel (%p142) target = $region16
      $region15: #{cba_forward.1} parent=11 // pred_region
        %p145 = scmp.lt.s32.totalorder %s18, 0
        %s146 = scalar_select %p145, %s18, 0
        %s147 = smul.addr %s146, 4
        %s148 = scalar_lea.vmem %s1, %s147
      $region16: #{cba_forward.1} parent=11 // pred_fallthru
        _
      // Predicated region
      $region17: #{cba_forward.1} parent=11 // pred_check
        %p149 = pneg %p99
      $region18: #{cba_forward.1} parent=11 // pred_check_branch
        %151 = sbr.rel (%p149) target = $region20
      $region19: #{cba_forward.1} parent=11 // pred_region
        %p152 = scmp.lt.s32.totalorder %s18, 0
        %s153 = scalar_select %p152, %s18, 0
        %s154 = smul.addr %s153, 2
        %s155 = scalar_lea.vmem %s2, %s154
      $region20: #{cba_forward.1} parent=11 // pred_fallthru
        _
    $region12: #{cba_forward.1} parent=5 // pred_fallthru
      _
    %p156 = scmp.lt.s32.totalorder %s9, 2
    // Predicated region
    $region21: #{cba_forward.1} parent=5 // pred_check
      %p157 = pneg %p156
    $region22: #{cba_forward.1} parent=5 // pred_check_branch
      %159 = sbr.rel (%p157) target = $region24
    $region23: #{cba_forward.1} parent=5 // pred_region
      // Predicated region
      $region25: #{cba_forward.1} parent=23 // pred_check
        %p160 = pneg %p41
      $region26: #{cba_forward.1} parent=23 // pred_check_branch
        %162 = sbr.rel (%p160) target = $region28
      $region27: #{cba_forward.1} parent=23 // pred_region
        %p163 = scmp.lt.s32.totalorder %s17, 1
        %s164 = scalar_select %p163, %s17, 1
        %s165 = smul.addr %s164, 36
        %s166 = smul.addr %s165, 4
        %s167 = scalar_lea.vmem %s0, %s166
      $region28: #{cba_forward.1} parent=23 // pred_fallthru
        _
    $region24: #{cba_forward.1} parent=5 // pred_fallthru
      _
    %p168 = scmp.le.s32.totalorder 1, %s9
    %p169 = scmp.lt.s32.totalorder %s9, 3
    %p170 = pnand %p168, %p169
    %p171 = pneg %p170
    // Predicated region
    $region29: #{cba_forward.1} parent=5 // pred_check
      _
    $region30: #{cba_forward.1} parent=5 // pred_check_branch
      %173 = sbr.rel (%p170) target = $region32
    $region31: #{cba_forward.1} parent=5 // pred_region
      %s174 = ssub.s32 %s9, 1
      %p175 = scmp.lt.s32.totalorder %s19, 1
      %s176 = scalar_select %p175, %s19, 1
      %s177 = smul.addr %s176, 36
      %s178 = smul.addr %s177, 4
      %s179 = scalar_lea.vmem %s0, %s178
      %p180 = pneg %p47
      %p181 = pneg %p44
      %p182 = scmp.lt.s32.totalorder %s18, 0
      %s183 = scalar_select %p182, %s18, 0
      %s184 = smul.addr %s183, 4
      %s185 = scalar_lea.vmem %s1, %s184
      %p186 = pneg %p73
      %p187 = pneg %p70
      %p188 = scmp.lt.s32.totalorder %s18, 0
      %s189 = scalar_select %p188, %s18, 0
      %s190 = smul.addr %s189, 2
      %s191 = scalar_lea.vmem %s2, %s190
      %p192 = pneg %p99
      %p193 = pneg %p96
      %p194 = pneg %p127
      %p195 = pneg %p124
      %p196 = scmp.lt.s32.totalorder %s19, 1
      %s197 = scalar_select %p196, %s19, 1
      %p198 = scmp.lt.s32.totalorder %s18, 0
      %s199 = scalar_select %p198, %s18, 0
      %s200 = smul.addr %s197, 32
      %s201 = sadd.s32 %s199, %s200
      %s202 = smul.addr %s201, 8
      %s203 = scalar_lea.vmem %s3, %s202
      %p204 = scmp.lt.s32.totalorder %s19, 1
      %s205 = scalar_select %p204, %s19, 1
      %s206 = smul.addr %s205, 36
      %s207 = smul.addr %s206, 4
      %s208 = scalar_lea.vmem %s0, %s207
      %p209 = scmp.lt.s32.totalorder %s18, 0
      %s210 = scalar_select %p209, %s18, 0
      %s211 = smul.addr %s210, 4
      %s212 = scalar_lea.vmem %s1, %s211
      %p213 = scmp.lt.s32.totalorder %s18, 0
      %s214 = scalar_select %p213, %s18, 0
      %s215 = smul.addr %s214, 2
      %s216 = scalar_lea.vmem %s2, %s215
      %p217 = scmp.lt.s32.totalorder %s19, 1
      %s218 = scalar_select %p217, %s19, 1
      %p219 = scmp.lt.s32.totalorder %s18, 0
      %s220 = scalar_select %p219, %s18, 0
      %s221 = smul.addr %s218, 32
      %s222 = sadd.s32 %s220, %s221
      %s223 = smul.addr %s222, 8
      %s224 = scalar_lea.vmem %s3, %s223
      %v226 = vld [vmem:[%s208] sm:$0xf]
      %v227 = vld [vmem:[%s208 + $0x4] sm:$0xf]
      %v228 = vld [vmem:[%s208 + $0x8] sm:$0xf]
      %v229 = vld [vmem:[%s208 + $0xc] sm:$0xf]
      %v230 = vld [vmem:[%s208 + $0x10] sm:$0xf]
      %v231 = vld [vmem:[%s208 + $0x14] sm:$0xf]
      %v232 = vld [vmem:[%s208 + $0x18] sm:$0xf]
      %v233 = vld [vmem:[%s208 + $0x1c] sm:$0xf]
      %v234 = vld [vmem:[%s208 + $0x20] sm:$0xf]
      %v235 = vld [vmem:[%s208 + $0x24] sm:$0xf]
      %v236 = vld [vmem:[%s208 + $0x28] sm:$0xf]
      %v237 = vld [vmem:[%s208 + $0x2c] sm:$0xf]
      %v238 = vld [vmem:[%s208 + $0x30] sm:$0xf]
      %v239 = vld [vmem:[%s208 + $0x34] sm:$0xf]
      %v240 = vld [vmem:[%s208 + $0x38] sm:$0xf]
      %v241 = vld [vmem:[%s208 + $0x3c] sm:$0xf]
      %v242 = vld [vmem:[%s208 + $0x40] sm:$0xf]
      %v243 = vld [vmem:[%s208 + $0x44] sm:$0xf]
      %v244 = vld [vmem:[%s208 + $0x48] sm:$0xf]
      %v245 = vld [vmem:[%s208 + $0x4c] sm:$0xf]
      %v246 = vld [vmem:[%s208 + $0x50] sm:$0xf]
      %v247 = vld [vmem:[%s208 + $0x54] sm:$0xf]
      %v248 = vld [vmem:[%s208 + $0x58] sm:$0xf]
      %v249 = vld [vmem:[%s208 + $0x5c] sm:$0xf]
      %v250 = vld [vmem:[%s208 + $0x60] sm:$0xf]
      %v251 = vld [vmem:[%s208 + $0x64] sm:$0xf]
      %v252 = vld [vmem:[%s208 + $0x68] sm:$0xf]
      %v253 = vld [vmem:[%s208 + $0x6c] sm:$0xf]
      %v254 = vld [vmem:[%s208 + $0x70] sm:$0xf]
      %v255 = vld [vmem:[%s208 + $0x74] sm:$0xf]
      %v256 = vld [vmem:[%s208 + $0x78] sm:$0xf]
      %v257 = vld [vmem:[%s208 + $0x7c] sm:$0xf]
      %v258 = vld [vmem:[%s208 + $0x80] sm:$0xf]
      %v259 = vld [vmem:[%s208 + $0x84] sm:$0xf]
      %v260 = vld [vmem:[%s208 + $0x88] sm:$0xf]
      %v261 = vld [vmem:[%s208 + $0x8c] sm:$0xf]
      %v262 = vld [vmem:[%s212] sm:$0xf]
      %v263 = vld [vmem:[%s212 + $0x4] sm:$0x3]
      %s264 = scalar_lea.vmem %s212, 8
      %v265 = vld [vmem:[%s264] sm:$0xf]
      %v266 = vld [vmem:[%s264 + $0x4] sm:$0x3]
      %v299 = vunpack.c.l.b16 %v228
      %v300 = vunpack.c.l.b16 %v229
      %v301 = vunpack.c.l.b16 %v230
      %v302 = vunpack.c.l.b16 %v231
      %v303 = vunpack.c.l.b16 %v232
      %v304 = vunpack.c.l.b16 %v233
      %v305 = vunpack.c.l.b16 %v234
      %v306 = vunpack.c.l.b16 %v235
      %v307 = vunpack.c.l.b16 %v236
      %v308 = vunpack.c.l.b16 %v237
      %v309 = vunpack.c.l.b16 %v238
      %v310 = vunpack.c.l.b16 %v239
      %v311 = vunpack.c.l.b16 %v240
      %v312 = vunpack.c.l.b16 %v241
      %v313 = vunpack.c.l.b16 %v242
      %v314 = vunpack.c.l.b16 %v243
      %v315 = vunpack.c.l.b16 %v244
      %v316 = vunpack.c.l.b16 %v245
      %v317 = vunpack.c.l.b16 %v246
      %v318 = vunpack.c.l.b16 %v247
      %v319 = vunpack.c.l.b16 %v248
      %v320 = vunpack.c.l.b16 %v249
      %v321 = vunpack.c.l.b16 %v250
      %v322 = vunpack.c.l.b16 %v251
      %v323 = vunpack.c.l.b16 %v252
      %v324 = vunpack.c.l.b16 %v253
      %v325 = vunpack.c.l.b16 %v254
      %v326 = vunpack.c.l.b16 %v255
      %v327 = vunpack.c.l.b16 %v256
      %v328 = vunpack.c.l.b16 %v257
      %v329 = vunpack.c.l.b16 %v258
      %v330 = vunpack.c.l.b16 %v259
      %v331 = vpack.c.b16 %v300, %v299
      %v332 = vpack.c.b16 %v302, %v301
      %v333 = vpack.c.b16 %v304, %v303
      %v334 = vpack.c.b16 %v306, %v305
      %v335 = vpack.c.b16 %v308, %v307
      %v336 = vpack.c.b16 %v310, %v309
      %v337 = vpack.c.b16 %v312, %v311
      %v338 = vpack.c.b16 %v314, %v313
      %v339 = vpack.c.b16 %v316, %v315
      %v340 = vpack.c.b16 %v318, %v317
      %v341 = vpack.c.b16 %v320, %v319
      %v342 = vpack.c.b16 %v322, %v321
      %v343 = vpack.c.b16 %v324, %v323
      %v344 = vpack.c.b16 %v326, %v325
      %v345 = vpack.c.b16 %v328, %v327
      %v346 = vpack.c.b16 %v330, %v329
      %v349 = vunpack.c.l.b16 %v265
      %v350 = vunpack.c.l.b16 %v266
      %v351 = vpack.c.b16 %v350, %v349
      %vm352 = vcmask 97280
      %v354 = vsel %vm352, %v331, 0
      %v357 = vsel %vm352, %v332, 0
      %v360 = vsel %vm352, %v333, 0
      %v363 = vsel %vm352, %v334, 0
      %v366 = vsel %vm352, %v335, 0
      %v369 = vsel %vm352, %v336, 0
      %v372 = vsel %vm352, %v337, 0
      %v375 = vsel %vm352, %v338, 0
      %v378 = vsel %vm352, %v339, 0
      %v381 = vsel %vm352, %v340, 0
      %v384 = vsel %vm352, %v341, 0
      %v387 = vsel %vm352, %v342, 0
      %v390 = vsel %vm352, %v343, 0
      %v393 = vsel %vm352, %v344, 0
      %v396 = vsel %vm352, %v345, 0
      %v399 = vsel %vm352, %v346, 0
      %vm401 = vcmask 1045504
      %v403 = vsel %vm401, %v351, 0
      %405 = vmatprep.subr.bf16.mxu0 0
      %406 = vmatpush1.bf16.msra.mxu0 0
      %407 = vmatprep.subr.bf16.mxu0 0
      %408 = vmatpush1.bf16.msra.mxu0 0
      %409 = vmatprep.subr.bf16.mxu0 0
      %410 = vmatpush1.bf16.msra.mxu0 0
      %411 = vmatprep.subr.bf16.mxu0 0
      %412 = vmatpush1.bf16.msra.mxu0 0
      %413 = vmatprep.subr.bf16.mxu0 0
      %414 = vmatpush1.bf16.msra.mxu0 0
      %415 = vmatprep.subr.bf16.mxu0 0
      %416 = vmatpush1.bf16.msra.mxu0 0
      %417 = vmatprep.subr.bf16.mxu0 0
      %418 = vmatpush1.bf16.msra.mxu0 0
      %419 = vmatprep.subr.bf16.mxu0 0
      %420 = vmatpush1.bf16.msra.mxu0 %v403
      %421 = vmatprep.subr.bf16.mxu0 0
      %422 = vmatpush2.bf16.msra.mxu0 0
      %423 = vmatprep.subr.bf16.mxu0 0
      %424 = vmatpush2.bf16.msra.mxu0 0
      %425 = vmatprep.subr.bf16.mxu0 0
      %426 = vmatpush2.bf16.msra.mxu0 0
      %427 = vmatprep.subr.bf16.mxu0 0
      %428 = vmatpush2.bf16.msra.mxu0 0
      %429 = vmatprep.subr.bf16.mxu0 0
      %430 = vmatpush2.bf16.msra.mxu0 0
      %431 = vmatprep.subr.bf16.mxu0 0
      %432 = vmatpush2.bf16.msra.mxu0 0
      %433 = vmatprep.subr.bf16.mxu0 0
      %434 = vmatpush2.bf16.msra.mxu0 0
      %435 = vmatprep.subr.bf16.mxu0 0
      %436 = vmatpush2.bf16.msra.mxu0 0
      %437 = vmatprep.mubr.bf16.mxu0 0
      %438 = vmatmul.mubr.bf16.gmra.mxu0 %v354
      %v439 = vpop.f32.mrf.mxu0
      %v440 = vadd.f32 0.0, %v439
      %v441 = vpop.f32.mrf.mxu0
      %v442 = vpop.f32.mrf.mxu0
      %v443 = vadd.f32 0.0, %v442
      %v444 = vpop.f32.mrf.mxu0
      %445 = vmatprep.mubr.bf16.mxu0 0
      %446 = vmatmul.mubr.bf16.gmra.mxu0 %v357
      %v447 = vpop.f32.mrf.mxu0
      %v448 = vadd.f32 0.0, %v447
      %v449 = vpop.f32.mrf.mxu0
      %v450 = vpop.f32.mrf.mxu0
      %v451 = vadd.f32 0.0, %v450
      %v452 = vpop.f32.mrf.mxu0
      %453 = vmatprep.mubr.bf16.mxu0 0
      %454 = vmatmul.mubr.bf16.gmra.mxu0 %v360
      %v455 = vpop.f32.mrf.mxu0
      %v456 = vadd.f32 0.0, %v455
      %v457 = vpop.f32.mrf.mxu0
      %v458 = vpop.f32.mrf.mxu0
      %v459 = vadd.f32 0.0, %v458
      %v460 = vpop.f32.mrf.mxu0
      %461 = vmatprep.mubr.bf16.mxu0 0
      %462 = vmatmul.mubr.bf16.gmra.mxu0 %v363
      %v463 = vpop.f32.mrf.mxu0
      %v464 = vadd.f32 0.0, %v463
      %v465 = vpop.f32.mrf.mxu0
      %v466 = vpop.f32.mrf.mxu0
      %v467 = vadd.f32 0.0, %v466
      %v468 = vpop.f32.mrf.mxu0
      %469 = vmatprep.mubr.bf16.mxu0 0
      %470 = vmatmul.mubr.bf16.gmra.mxu0 %v366
      %v471 = vpop.f32.mrf.mxu0
      %v472 = vadd.f32 0.0, %v471
      %v473 = vpop.f32.mrf.mxu0
      %v474 = vpop.f32.mrf.mxu0
      %v475 = vadd.f32 0.0, %v474
      %v476 = vpop.f32.mrf.mxu0
      %477 = vmatprep.mubr.bf16.mxu0 0
      %478 = vmatmul.mubr.bf16.gmra.mxu0 %v369
      %v479 = vpop.f32.mrf.mxu0
      %v480 = vadd.f32 0.0, %v479
      %v481 = vpop.f32.mrf.mxu0
      %v482 = vpop.f32.mrf.mxu0
      %v483 = vadd.f32 0.0, %v482
      %v484 = vpop.f32.mrf.mxu0
      %485 = vmatprep.mubr.bf16.mxu0 0
      %486 = vmatmul.mubr.bf16.gmra.mxu0 %v372
      %v487 = vpop.f32.mrf.mxu0
      %v488 = vadd.f32 0.0, %v487
      %v489 = vpop.f32.mrf.mxu0
      %v490 = vpop.f32.mrf.mxu0
      %v491 = vadd.f32 0.0, %v490
      %v492 = vpop.f32.mrf.mxu0
      %493 = vmatprep.mubr.bf16.mxu0 0
      %494 = vmatmul.mubr.bf16.gmra.mxu0 %v375
      %v495 = vpop.f32.mrf.mxu0
      %v496 = vadd.f32 0.0, %v495
      %v497 = vpop.f32.mrf.mxu0
      %v498 = vpop.f32.mrf.mxu0
      %v499 = vadd.f32 0.0, %v498
      %v500 = vpop.f32.mrf.mxu0
      %501 = vmatprep.mubr.bf16.mxu0 0
      %502 = vmatmul.mubr.bf16.gmra.mxu0 %v378
      %v503 = vpop.f32.mrf.mxu0
      %v504 = vadd.f32 0.0, %v503
      %v505 = vpop.f32.mrf.mxu0
      %v506 = vpop.f32.mrf.mxu0
      %v507 = vadd.f32 0.0, %v506
      %v508 = vpop.f32.mrf.mxu0
      %509 = vmatprep.mubr.bf16.mxu0 0
      %510 = vmatmul.mubr.bf16.gmra.mxu0 %v381
      %v511 = vpop.f32.mrf.mxu0
      %v512 = vadd.f32 0.0, %v511
      %v513 = vpop.f32.mrf.mxu0
      %v514 = vpop.f32.mrf.mxu0
      %v515 = vadd.f32 0.0, %v514
      %v516 = vpop.f32.mrf.mxu0
      %517 = vmatprep.mubr.bf16.mxu0 0
      %518 = vmatmul.mubr.bf16.gmra.mxu0 %v384
      %v519 = vpop.f32.mrf.mxu0
      %v520 = vadd.f32 0.0, %v519
      %v521 = vpop.f32.mrf.mxu0
      %v522 = vpop.f32.mrf.mxu0
      %v523 = vadd.f32 0.0, %v522
      %v524 = vpop.f32.mrf.mxu0
      %525 = vmatprep.mubr.bf16.mxu0 0
      %526 = vmatmul.mubr.bf16.gmra.mxu0 %v387
      %v527 = vpop.f32.mrf.mxu0
      %v528 = vadd.f32 0.0, %v527
      %v529 = vpop.f32.mrf.mxu0
      %v530 = vpop.f32.mrf.mxu0
      %v531 = vadd.f32 0.0, %v530
      %v532 = vpop.f32.mrf.mxu0
      %533 = vmatprep.mubr.bf16.mxu0 0
      %534 = vmatmul.mubr.bf16.gmra.mxu0 %v390
      %v535 = vpop.f32.mrf.mxu0
      %v536 = vadd.f32 0.0, %v535
      %v537 = vpop.f32.mrf.mxu0
      %v538 = vpop.f32.mrf.mxu0
      %v539 = vadd.f32 0.0, %v538
      %v540 = vpop.f32.mrf.mxu0
      %541 = vmatprep.mubr.bf16.mxu0 0
      %542 = vmatmul.mubr.bf16.gmra.mxu0 %v393
      %v543 = vpop.f32.mrf.mxu0
      %v544 = vadd.f32 0.0, %v543
      %v545 = vpop.f32.mrf.mxu0
      %v546 = vpop.f32.mrf.mxu0
      %v547 = vadd.f32 0.0, %v546
      %v548 = vpop.f32.mrf.mxu0
      %549 = vmatprep.mubr.bf16.mxu0 0
      %550 = vmatmul.mubr.bf16.gmra.mxu0 %v396
      %v551 = vpop.f32.mrf.mxu0
      %v552 = vadd.f32 0.0, %v551
      %v553 = vpop.f32.mrf.mxu0
      %v554 = vpop.f32.mrf.mxu0
      %v555 = vadd.f32 0.0, %v554
      %v556 = vpop.f32.mrf.mxu0
      %557 = vmatprep.mubr.bf16.mxu0 0
      %558 = vmatmul.mubr.bf16.gmra.mxu0 %v399
      %v559 = vpop.f32.mrf.mxu0
      %v560 = vadd.f32 0.0, %v559
      %v561 = vpop.f32.mrf.mxu0
      %v562 = vpop.f32.mrf.mxu0
      %v563 = vadd.f32 0.0, %v562
      %v564 = vpop.f32.mrf.mxu0
      %565 = vdwg.mxu0
      %v568 = vunpack.c.l.b16 %v226
      %v569 = vunpack.c.l.b16 %v227
      %v570 = vpack.c.b16 %v569, %v568
      %v573 = vunpack.c.l.b16 %v262
      %v574 = vunpack.c.l.b16 %v263
      %v575 = vpack.c.b16 %v574, %v573
      %v577 = vsel %vm352, %v570, 0
      %v580 = vsel %vm401, %v575, 0
      %582 = vmatprep.subr.bf16.mxu0 0
      %583 = vmatpush1.bf16.msra.mxu0 0
      %584 = vmatprep.subr.bf16.mxu0 0
      %585 = vmatpush1.bf16.msra.mxu0 0
      %586 = vmatprep.subr.bf16.mxu0 0
      %587 = vmatpush1.bf16.msra.mxu0 0
      %588 = vmatprep.subr.bf16.mxu0 0
      %589 = vmatpush1.bf16.msra.mxu0 0
      %590 = vmatprep.subr.bf16.mxu0 0
      %591 = vmatpush1.bf16.msra.mxu0 0
      %592 = vmatprep.subr.bf16.mxu0 0
      %593 = vmatpush1.bf16.msra.mxu0 0
      %594 = vmatprep.subr.bf16.mxu0 0
      %595 = vmatpush1.bf16.msra.mxu0 0
      %596 = vmatprep.subr.bf16.mxu0 0
      %597 = vmatpush1.bf16.msra.mxu0 %v580
      %598 = vmatprep.subr.bf16.mxu0 0
      %599 = vmatpush2.bf16.msra.mxu0 0
      %600 = vmatprep.subr.bf16.mxu0 0
      %601 = vmatpush2.bf16.msra.mxu0 0
      %602 = vmatprep.subr.bf16.mxu0 0
      %603 = vmatpush2.bf16.msra.mxu0 0
      %604 = vmatprep.subr.bf16.mxu0 0
      %605 = vmatpush2.bf16.msra.mxu0 0
      %606 = vmatprep.subr.bf16.mxu0 0
      %607 = vmatpush2.bf16.msra.mxu0 0
      %608 = vmatprep.subr.bf16.mxu0 0
      %609 = vmatpush2.bf16.msra.mxu0 0
      %610 = vmatprep.subr.bf16.mxu0 0
      %611 = vmatpush2.bf16.msra.mxu0 0
      %612 = vmatprep.subr.bf16.mxu0 0
      %613 = vmatpush2.bf16.msra.mxu0 0
      %614 = vmatprep.mubr.bf16.mxu0 0
      %615 = vmatmul.mubr.bf16.gmra.mxu0 %v577
      %v616 = vpop.f32.mrf.mxu0
      %v617 = vadd.f32 %v440, %v616
      %v618 = vpop.f32.mrf.mxu0
      %v619 = vpop.f32.mrf.mxu0
      %v620 = vadd.f32 %v443, %v619
      %v621 = vpop.f32.mrf.mxu0
      %622 = vmatprep.mubr.bf16.mxu0 0
      %623 = vmatmul.mubr.bf16.gmra.mxu0 %v354
      %v624 = vpop.f32.mrf.mxu0
      %v625 = vadd.f32 %v448, %v624
      %v626 = vpop.f32.mrf.mxu0
      %v627 = vpop.f32.mrf.mxu0
      %v628 = vadd.f32 %v451, %v627
      %v629 = vpop.f32.mrf.mxu0
      %630 = vmatprep.mubr.bf16.mxu0 0
      %631 = vmatmul.mubr.bf16.gmra.mxu0 %v357
      %v632 = vpop.f32.mrf.mxu0
      %v633 = vadd.f32 %v456, %v632
      %v634 = vpop.f32.mrf.mxu0
      %v635 = vpop.f32.mrf.mxu0
      %v636 = vadd.f32 %v459, %v635
      %v637 = vpop.f32.mrf.mxu0
      %638 = vmatprep.mubr.bf16.mxu0 0
      %639 = vmatmul.mubr.bf16.gmra.mxu0 %v360
      %v640 = vpop.f32.mrf.mxu0
      %v641 = vadd.f32 %v464, %v640
      %v642 = vpop.f32.mrf.mxu0
      %v643 = vpop.f32.mrf.mxu0
      %v644 = vadd.f32 %v467, %v643
      %v645 = vpop.f32.mrf.mxu0
      %646 = vmatprep.mubr.bf16.mxu0 0
      %647 = vmatmul.mubr.bf16.gmra.mxu0 %v363
      %v648 = vpop.f32.mrf.mxu0
      %v649 = vadd.f32 %v472, %v648
      %v650 = vpop.f32.mrf.mxu0
      %v651 = vpop.f32.mrf.mxu0
      %v652 = vadd.f32 %v475, %v651
      %v653 = vpop.f32.mrf.mxu0
      %654 = vmatprep.mubr.bf16.mxu0 0
      %655 = vmatmul.mubr.bf16.gmra.mxu0 %v366
      %v656 = vpop.f32.mrf.mxu0
      %v657 = vadd.f32 %v480, %v656
      %v658 = vpop.f32.mrf.mxu0
      %v659 = vpop.f32.mrf.mxu0
      %v660 = vadd.f32 %v483, %v659
      %v661 = vpop.f32.mrf.mxu0
      %662 = vmatprep.mubr.bf16.mxu0 0
      %663 = vmatmul.mubr.bf16.gmra.mxu0 %v369
      %v664 = vpop.f32.mrf.mxu0
      %v665 = vadd.f32 %v488, %v664
      %v666 = vpop.f32.mrf.mxu0
      %v667 = vpop.f32.mrf.mxu0
      %v668 = vadd.f32 %v491, %v667
      %v669 = vpop.f32.mrf.mxu0
      %670 = vmatprep.mubr.bf16.mxu0 0
      %671 = vmatmul.mubr.bf16.gmra.mxu0 %v372
      %v672 = vpop.f32.mrf.mxu0
      %v673 = vadd.f32 %v496, %v672
      %v674 = vpop.f32.mrf.mxu0
      %v675 = vpop.f32.mrf.mxu0
      %v676 = vadd.f32 %v499, %v675
      %v677 = vpop.f32.mrf.mxu0
      %678 = vmatprep.mubr.bf16.mxu0 0
      %679 = vmatmul.mubr.bf16.gmra.mxu0 %v375
      %v680 = vpop.f32.mrf.mxu0
      %v681 = vadd.f32 %v504, %v680
      %v682 = vpop.f32.mrf.mxu0
      %v683 = vpop.f32.mrf.mxu0
      %v684 = vadd.f32 %v507, %v683
      %v685 = vpop.f32.mrf.mxu0
      %686 = vmatprep.mubr.bf16.mxu0 0
      %687 = vmatmul.mubr.bf16.gmra.mxu0 %v378
      %v688 = vpop.f32.mrf.mxu0
      %v689 = vadd.f32 %v512, %v688
      %v690 = vpop.f32.mrf.mxu0
      %v691 = vpop.f32.mrf.mxu0
      %v692 = vadd.f32 %v515, %v691
      %v693 = vpop.f32.mrf.mxu0
      %694 = vmatprep.mubr.bf16.mxu0 0
      %695 = vmatmul.mubr.bf16.gmra.mxu0 %v381
      %v696 = vpop.f32.mrf.mxu0
      %v697 = vadd.f32 %v520, %v696
      %v698 = vpop.f32.mrf.mxu0
      %v699 = vpop.f32.mrf.mxu0
      %v700 = vadd.f32 %v523, %v699
      %v701 = vpop.f32.mrf.mxu0
      %702 = vmatprep.mubr.bf16.mxu0 0
      %703 = vmatmul.mubr.bf16.gmra.mxu0 %v384
      %v704 = vpop.f32.mrf.mxu0
      %v705 = vadd.f32 %v528, %v704
      %v706 = vpop.f32.mrf.mxu0
      %v707 = vpop.f32.mrf.mxu0
      %v708 = vadd.f32 %v531, %v707
      %v709 = vpop.f32.mrf.mxu0
      %710 = vmatprep.mubr.bf16.mxu0 0
      %711 = vmatmul.mubr.bf16.gmra.mxu0 %v387
      %v712 = vpop.f32.mrf.mxu0
      %v713 = vadd.f32 %v536, %v712
      %v714 = vpop.f32.mrf.mxu0
      %v715 = vpop.f32.mrf.mxu0
      %v716 = vadd.f32 %v539, %v715
      %v717 = vpop.f32.mrf.mxu0
      %718 = vmatprep.mubr.bf16.mxu0 0
      %719 = vmatmul.mubr.bf16.gmra.mxu0 %v390
      %v720 = vpop.f32.mrf.mxu0
      %v721 = vadd.f32 %v544, %v720
      %v722 = vpop.f32.mrf.mxu0
      %v723 = vpop.f32.mrf.mxu0
      %v724 = vadd.f32 %v547, %v723
      %v725 = vpop.f32.mrf.mxu0
      %726 = vmatprep.mubr.bf16.mxu0 0
      %727 = vmatmul.mubr.bf16.gmra.mxu0 %v393
      %v728 = vpop.f32.mrf.mxu0
      %v729 = vadd.f32 %v552, %v728
      %v730 = vpop.f32.mrf.mxu0
      %v731 = vpop.f32.mrf.mxu0
      %v732 = vadd.f32 %v555, %v731
      %v733 = vpop.f32.mrf.mxu0
      %734 = vmatprep.mubr.bf16.mxu0 0
      %735 = vmatmul.mubr.bf16.gmra.mxu0 %v396
      %v736 = vpop.f32.mrf.mxu0
      %v737 = vadd.f32 %v560, %v736
      %v738 = vpop.f32.mrf.mxu0
      %v739 = vpop.f32.mrf.mxu0
      %v740 = vadd.f32 %v563, %v739
      %v741 = vpop.f32.mrf.mxu0
      %742 = vdwg.mxu0
      %s743 = scalar_lea.vmem %s212, 16
      %v744 = vld [vmem:[%s743] sm:$0xf]
      %v745 = vld [vmem:[%s743 + $0x4] sm:$0x3]
      %v748 = vunpack.c.l.b16 %v260
      %v749 = vunpack.c.l.b16 %v261
      %v750 = vpack.c.b16 %v749, %v748
      %v753 = vunpack.c.l.b16 %v744
      %v754 = vunpack.c.l.b16 %v745
      %v755 = vpack.c.b16 %v754, %v753
      %v757 = vsel %vm352, %v750, 0
      %v760 = vsel %vm401, %v755, 0
      %762 = vmatprep.subr.bf16.mxu0 0
      %763 = vmatpush1.bf16.msra.mxu0 0
      %764 = vmatprep.subr.bf16.mxu0 0
      %765 = vmatpush1.bf16.msra.mxu0 0
      %766 = vmatprep.subr.bf16.mxu0 0
      %767 = vmatpush1.bf16.msra.mxu0 0
      %768 = vmatprep.subr.bf16.mxu0 0
      %769 = vmatpush1.bf16.msra.mxu0 0
      %770 = vmatprep.subr.bf16.mxu0 0
      %771 = vmatpush1.bf16.msra.mxu0 0
      %772 = vmatprep.subr.bf16.mxu0 0
      %773 = vmatpush1.bf16.msra.mxu0 0
      %774 = vmatprep.subr.bf16.mxu0 0
      %775 = vmatpush1.bf16.msra.mxu0 0
      %776 = vmatprep.subr.bf16.mxu0 0
      %777 = vmatpush1.bf16.msra.mxu0 %v760
      %778 = vmatprep.subr.bf16.mxu0 0
      %779 = vmatpush2.bf16.msra.mxu0 0
      %780 = vmatprep.subr.bf16.mxu0 0
      %781 = vmatpush2.bf16.msra.mxu0 0
      %782 = vmatprep.subr.bf16.mxu0 0
      %783 = vmatpush2.bf16.msra.mxu0 0
      %784 = vmatprep.subr.bf16.mxu0 0
      %785 = vmatpush2.bf16.msra.mxu0 0
      %786 = vmatprep.subr.bf16.mxu0 0
      %787 = vmatpush2.bf16.msra.mxu0 0
      %788 = vmatprep.subr.bf16.mxu0 0
      %789 = vmatpush2.bf16.msra.mxu0 0
      %790 = vmatprep.subr.bf16.mxu0 0
      %791 = vmatpush2.bf16.msra.mxu0 0
      %792 = vmatprep.subr.bf16.mxu0 0
      %793 = vmatpush2.bf16.msra.mxu0 0
      %794 = vmatprep.mubr.bf16.mxu0 0
      %795 = vmatmul.mubr.bf16.gmra.mxu0 %v357
      %v796 = vpop.f32.mrf.mxu0
      %v797 = vadd.f32 0.0, %v796
      %v798 = vpop.f32.mrf.mxu0
      %v799 = vpop.f32.mrf.mxu0
      %v800 = vadd.f32 0.0, %v799
      %v801 = vpop.f32.mrf.mxu0
      %802 = vmatprep.mubr.bf16.mxu0 0
      %803 = vmatmul.mubr.bf16.gmra.mxu0 %v360
      %v804 = vpop.f32.mrf.mxu0
      %v805 = vadd.f32 0.0, %v804
      %v806 = vpop.f32.mrf.mxu0
      %v807 = vpop.f32.mrf.mxu0
      %v808 = vadd.f32 0.0, %v807
      %v809 = vpop.f32.mrf.mxu0
      %810 = vmatprep.mubr.bf16.mxu0 0
      %811 = vmatmul.mubr.bf16.gmra.mxu0 %v363
      %v812 = vpop.f32.mrf.mxu0
      %v813 = vadd.f32 0.0, %v812
      %v814 = vpop.f32.mrf.mxu0
      %v815 = vpop.f32.mrf.mxu0
      %v816 = vadd.f32 0.0, %v815
      %v817 = vpop.f32.mrf.mxu0
      %818 = vmatprep.mubr.bf16.mxu0 0
      %819 = vmatmul.mubr.bf16.gmra.mxu0 %v366
      %v820 = vpop.f32.mrf.mxu0
      %v821 = vadd.f32 0.0, %v820
      %v822 = vpop.f32.mrf.mxu0
      %v823 = vpop.f32.mrf.mxu0
      %v824 = vadd.f32 0.0, %v823
      %v825 = vpop.f32.mrf.mxu0
      %826 = vmatprep.mubr.bf16.mxu0 0
      %827 = vmatmul.mubr.bf16.gmra.mxu0 %v369
      %v828 = vpop.f32.mrf.mxu0
      %v829 = vadd.f32 0.0, %v828
      %v830 = vpop.f32.mrf.mxu0
      %v831 = vpop.f32.mrf.mxu0
      %v832 = vadd.f32 0.0, %v831
      %v833 = vpop.f32.mrf.mxu0
      %834 = vmatprep.mubr.bf16.mxu0 0
      %835 = vmatmul.mubr.bf16.gmra.mxu0 %v372
      %v836 = vpop.f32.mrf.mxu0
      %v837 = vadd.f32 0.0, %v836
      %v838 = vpop.f32.mrf.mxu0
      %v839 = vpop.f32.mrf.mxu0
      %v840 = vadd.f32 0.0, %v839
      %v841 = vpop.f32.mrf.mxu0
      %842 = vmatprep.mubr.bf16.mxu0 0
      %843 = vmatmul.mubr.bf16.gmra.mxu0 %v375
      %v844 = vpop.f32.mrf.mxu0
      %v845 = vadd.f32 0.0, %v844
      %v846 = vpop.f32.mrf.mxu0
      %v847 = vpop.f32.mrf.mxu0
      %v848 = vadd.f32 0.0, %v847
      %v849 = vpop.f32.mrf.mxu0
      %850 = vmatprep.mubr.bf16.mxu0 0
      %851 = vmatmul.mubr.bf16.gmra.mxu0 %v378
      %v852 = vpop.f32.mrf.mxu0
      %v853 = vadd.f32 0.0, %v852
      %v854 = vpop.f32.mrf.mxu0
      %v855 = vpop.f32.mrf.mxu0
      %v856 = vadd.f32 0.0, %v855
      %v857 = vpop.f32.mrf.mxu0
      %858 = vmatprep.mubr.bf16.mxu0 0
      %859 = vmatmul.mubr.bf16.gmra.mxu0 %v381
      %v860 = vpop.f32.mrf.mxu0
      %v861 = vadd.f32 0.0, %v860
      %v862 = vpop.f32.mrf.mxu0
      %v863 = vpop.f32.mrf.mxu0
      %v864 = vadd.f32 0.0, %v863
      %v865 = vpop.f32.mrf.mxu0
      %866 = vmatprep.mubr.bf16.mxu0 0
      %867 = vmatmul.mubr.bf16.gmra.mxu0 %v384
      %v868 = vpop.f32.mrf.mxu0
      %v869 = vadd.f32 0.0, %v868
      %v870 = vpop.f32.mrf.mxu0
      %v871 = vpop.f32.mrf.mxu0
      %v872 = vadd.f32 0.0, %v871
      %v873 = vpop.f32.mrf.mxu0
      %874 = vmatprep.mubr.bf16.mxu0 0
      %875 = vmatmul.mubr.bf16.gmra.mxu0 %v387
      %v876 = vpop.f32.mrf.mxu0
      %v877 = vadd.f32 0.0, %v876
      %v878 = vpop.f32.mrf.mxu0
      %v879 = vpop.f32.mrf.mxu0
      %v880 = vadd.f32 0.0, %v879
      %v881 = vpop.f32.mrf.mxu0
      %882 = vmatprep.mubr.bf16.mxu0 0
      %883 = vmatmul.mubr.bf16.gmra.mxu0 %v390
      %v884 = vpop.f32.mrf.mxu0
      %v885 = vadd.f32 0.0, %v884
      %v886 = vpop.f32.mrf.mxu0
      %v887 = vpop.f32.mrf.mxu0
      %v888 = vadd.f32 0.0, %v887
      %v889 = vpop.f32.mrf.mxu0
      %890 = vmatprep.mubr.bf16.mxu0 0
      %891 = vmatmul.mubr.bf16.gmra.mxu0 %v393
      %v892 = vpop.f32.mrf.mxu0
      %v893 = vadd.f32 0.0, %v892
      %v894 = vpop.f32.mrf.mxu0
      %v895 = vpop.f32.mrf.mxu0
      %v896 = vadd.f32 0.0, %v895
      %v897 = vpop.f32.mrf.mxu0
      %898 = vmatprep.mubr.bf16.mxu0 0
      %899 = vmatmul.mubr.bf16.gmra.mxu0 %v396
      %v900 = vpop.f32.mrf.mxu0
      %v901 = vadd.f32 0.0, %v900
      %v902 = vpop.f32.mrf.mxu0
      %v903 = vpop.f32.mrf.mxu0
      %v904 = vadd.f32 0.0, %v903
      %v905 = vpop.f32.mrf.mxu0
      %906 = vmatprep.mubr.bf16.mxu0 0
      %907 = vmatmul.mubr.bf16.gmra.mxu0 %v399
      %v908 = vpop.f32.mrf.mxu0
      %v909 = vadd.f32 0.0, %v908
      %v910 = vpop.f32.mrf.mxu0
      %v911 = vpop.f32.mrf.mxu0
      %v912 = vadd.f32 0.0, %v911
      %v913 = vpop.f32.mrf.mxu0
      %914 = vmatprep.mubr.bf16.mxu0 0
      %915 = vmatmul.mubr.bf16.gmra.mxu0 %v757
      %v916 = vpop.f32.mrf.mxu0
      %v917 = vadd.f32 0.0, %v916
      %v918 = vpop.f32.mrf.mxu0
      %v919 = vpop.f32.mrf.mxu0
      %v920 = vadd.f32 0.0, %v919
      %v921 = vpop.f32.mrf.mxu0
      %922 = vdwg.mxu0
      %v923 = vadd.f32 %v617, %v797
      %v924 = vadd.f32 %v620, %v800
      %v925 = vadd.f32 %v625, %v805
      %v926 = vadd.f32 %v628, %v808
      %v927 = vadd.f32 %v633, %v813
      %v928 = vadd.f32 %v636, %v816
      %v929 = vadd.f32 %v641, %v821
      %v930 = vadd.f32 %v644, %v824
      %v931 = vadd.f32 %v649, %v829
      %v932 = vadd.f32 %v652, %v832
      %v933 = vadd.f32 %v657, %v837
      %v934 = vadd.f32 %v660, %v840
      %v935 = vadd.f32 %v665, %v845
      %v936 = vadd.f32 %v668, %v848
      %v937 = vadd.f32 %v673, %v853
      %v938 = vadd.f32 %v676, %v856
      %v939 = vadd.f32 %v681, %v861
      %v940 = vadd.f32 %v684, %v864
      %v941 = vadd.f32 %v689, %v869
      %v942 = vadd.f32 %v692, %v872
      %v943 = vadd.f32 %v697, %v877
      %v944 = vadd.f32 %v700, %v880
      %v945 = vadd.f32 %v705, %v885
      %v946 = vadd.f32 %v708, %v888
      %v947 = vadd.f32 %v713, %v893
      %v948 = vadd.f32 %v716, %v896
      %v949 = vadd.f32 %v721, %v901
      %v950 = vadd.f32 %v724, %v904
      %v951 = vadd.f32 %v729, %v909
      %v952 = vadd.f32 %v732, %v912
      %v953 = vadd.f32 %v737, %v917
      %v954 = vadd.f32 %v740, %v920
      %v955 = vld [vmem:[%s216] sm:$0x1]
      %v956 = vlaneseq
      %v957 = vshrl.u32 %v956, 7
      %v958 = vsub.s32 0, %v957
      %v959 = vrot.slane %v955, %v958
      %v960 = vmul.f32 %v923, %v959
      %v961 = vmul.f32 %v924, %v959
      %v962 = vmul.f32 %v925, %v959
      %v963 = vmul.f32 %v926, %v959
      %v964 = vmul.f32 %v927, %v959
      %v965 = vmul.f32 %v928, %v959
      %v966 = vmul.f32 %v929, %v959
      %v967 = vmul.f32 %v930, %v959
      %v968 = vmul.f32 %v931, %v959
      %v969 = vmul.f32 %v932, %v959
      %v970 = vmul.f32 %v933, %v959
      %v971 = vmul.f32 %v934, %v959
      %v972 = vmul.f32 %v935, %v959
      %v973 = vmul.f32 %v936, %v959
      %v974 = vmul.f32 %v937, %v959
      %v975 = vmul.f32 %v938, %v959
      %v976 = vmul.f32 %v939, %v959
      %v977 = vmul.f32 %v940, %v959
      %v978 = vmul.f32 %v941, %v959
      %v979 = vmul.f32 %v942, %v959
      %v980 = vmul.f32 %v943, %v959
      %v981 = vmul.f32 %v944, %v959
      %v982 = vmul.f32 %v945, %v959
      %v983 = vmul.f32 %v946, %v959
      %v984 = vmul.f32 %v947, %v959
      %v985 = vmul.f32 %v948, %v959
      %v986 = vmul.f32 %v949, %v959
      %v987 = vmul.f32 %v950, %v959
      %v988 = vmul.f32 %v951, %v959
      %v989 = vmul.f32 %v952, %v959
      %v990 = vmul.f32 %v953, %v959
      %v991 = vmul.f32 %v954, %v959
      %v992 = vld [vmem:[%s216 + $0x1] sm:$0x1]
      %v993 = vlaneseq
      %v994 = vshrl.u32 %v993, 7
      %v995 = vsub.s32 0, %v994
      %v996 = vrot.slane %v992, %v995
      %v997 = vadd.f32 %v960, %v996
      %v998 = vadd.f32 %v961, %v996
      %v999 = vadd.f32 %v962, %v996
      %v1000 = vadd.f32 %v963, %v996
      %v1001 = vadd.f32 %v964, %v996
      %v1002 = vadd.f32 %v965, %v996
      %v1003 = vadd.f32 %v966, %v996
      %v1004 = vadd.f32 %v967, %v996
      %v1005 = vadd.f32 %v968, %v996
      %v1006 = vadd.f32 %v969, %v996
      %v1007 = vadd.f32 %v970, %v996
      %v1008 = vadd.f32 %v971, %v996
      %v1009 = vadd.f32 %v972, %v996
      %v1010 = vadd.f32 %v973, %v996
      %v1011 = vadd.f32 %v974, %v996
      %v1012 = vadd.f32 %v975, %v996
      %v1013 = vadd.f32 %v976, %v996
      %v1014 = vadd.f32 %v977, %v996
      %v1015 = vadd.f32 %v978, %v996
      %v1016 = vadd.f32 %v979, %v996
      %v1017 = vadd.f32 %v980, %v996
      %v1018 = vadd.f32 %v981, %v996
      %v1019 = vadd.f32 %v982, %v996
      %v1020 = vadd.f32 %v983, %v996
      %v1021 = vadd.f32 %v984, %v996
      %v1022 = vadd.f32 %v985, %v996
      %v1023 = vadd.f32 %v986, %v996
      %v1024 = vadd.f32 %v987, %v996
      %v1025 = vadd.f32 %v988, %v996
      %v1026 = vadd.f32 %v989, %v996
      %v1027 = vadd.f32 %v990, %v996
      %v1028 = vadd.f32 %v991, %v996
      %v1029 = vmul.f32 %v997, 0.5
      %v1030 = vmul.f32 %v998, 0.5
      %v1031 = vmul.f32 %v999, 0.5
      %v1032 = vmul.f32 %v1000, 0.5
      %v1033 = vmul.f32 %v1001, 0.5
      %v1034 = vmul.f32 %v1002, 0.5
      %v1035 = vmul.f32 %v1003, 0.5
      %v1036 = vmul.f32 %v1004, 0.5
      %v1037 = vmul.f32 %v1005, 0.5
      %v1038 = vmul.f32 %v1006, 0.5
      %v1039 = vmul.f32 %v1007, 0.5
      %v1040 = vmul.f32 %v1008, 0.5
      %v1041 = vmul.f32 %v1009, 0.5
      %v1042 = vmul.f32 %v1010, 0.5
      %v1043 = vmul.f32 %v1011, 0.5
      %v1044 = vmul.f32 %v1012, 0.5
      %v1045 = vmul.f32 %v1013, 0.5
      %v1046 = vmul.f32 %v1014, 0.5
      %v1047 = vmul.f32 %v1015, 0.5
      %v1048 = vmul.f32 %v1016, 0.5
      %v1049 = vmul.f32 %v1017, 0.5
      %v1050 = vmul.f32 %v1018, 0.5
      %v1051 = vmul.f32 %v1019, 0.5
      %v1052 = vmul.f32 %v1020, 0.5
      %v1053 = vmul.f32 %v1021, 0.5
      %v1054 = vmul.f32 %v1022, 0.5
      %v1055 = vmul.f32 %v1023, 0.5
      %v1056 = vmul.f32 %v1024, 0.5
      %v1057 = vmul.f32 %v1025, 0.5
      %v1058 = vmul.f32 %v1026, 0.5
      %v1059 = vmul.f32 %v1027, 0.5
      %v1060 = vmul.f32 %v1028, 0.5
      %v1061 = vmul.f32 %v997, 0.70710677
      %v1062 = vmul.f32 %v998, 0.70710677
      %v1063 = vmul.f32 %v999, 0.70710677
      %v1064 = vmul.f32 %v1000, 0.70710677
      %v1065 = vmul.f32 %v1001, 0.70710677
      %v1066 = vmul.f32 %v1002, 0.70710677
      %v1067 = vmul.f32 %v1003, 0.70710677
      %v1068 = vmul.f32 %v1004, 0.70710677
      %v1069 = vmul.f32 %v1005, 0.70710677
      %v1070 = vmul.f32 %v1006, 0.70710677
      %v1071 = vmul.f32 %v1007, 0.70710677
      %v1072 = vmul.f32 %v1008, 0.70710677
      %v1073 = vmul.f32 %v1009, 0.70710677
      %v1074 = vmul.f32 %v1010, 0.70710677
      %v1075 = vmul.f32 %v1011, 0.70710677
      %v1076 = vmul.f32 %v1012, 0.70710677
      %v1077 = vmul.f32 %v1013, 0.70710677
      %v1078 = vmul.f32 %v1014, 0.70710677
      %v1079 = vmul.f32 %v1015, 0.70710677
      %v1080 = vmul.f32 %v1016, 0.70710677
      %v1081 = vmul.f32 %v1017, 0.70710677
      %v1082 = vmul.f32 %v1018, 0.70710677
      %v1083 = vmul.f32 %v1019, 0.70710677
      %v1084 = vmul.f32 %v1020, 0.70710677
      %v1085 = vmul.f32 %v1021, 0.70710677
      %v1086 = vmul.f32 %v1022, 0.70710677
      %v1087 = vmul.f32 %v1023, 0.70710677
      %v1088 = vmul.f32 %v1024, 0.70710677
      %v1089 = vmul.f32 %v1025, 0.70710677
      %v1090 = vmul.f32 %v1026, 0.70710677
      %v1091 = vmul.f32 %v1027, 0.70710677
      %v1092 = vmul.f32 %v1028, 0.70710677
      %v1093 = verf.f32.pop %v1061
      %v1094 = verf.f32.pop %v1062
      %v1095 = verf.f32.pop %v1063
      %v1096 = verf.f32.pop %v1064
      %v1097 = verf.f32.pop %v1065
      %v1098 = verf.f32.pop %v1066
      %v1099 = verf.f32.pop %v1067
      %v1100 = verf.f32.pop %v1068
      %v1101 = verf.f32.pop %v1069
      %v1102 = verf.f32.pop %v1070
      %v1103 = verf.f32.pop %v1071
      %v1104 = verf.f32.pop %v1072
      %v1105 = verf.f32.pop %v1073
      %v1106 = verf.f32.pop %v1074
      %v1107 = verf.f32.pop %v1075
      %v1108 = verf.f32.pop %v1076
      %v1109 = verf.f32.pop %v1077
      %v1110 = verf.f32.pop %v1078
      %v1111 = verf.f32.pop %v1079
      %v1112 = verf.f32.pop %v1080
      %v1113 = verf.f32.pop %v1081
      %v1114 = verf.f32.pop %v1082
      %v1115 = verf.f32.pop %v1083
      %v1116 = verf.f32.pop %v1084
      %v1117 = verf.f32.pop %v1085
      %v1118 = verf.f32.pop %v1086
      %v1119 = verf.f32.pop %v1087
      %v1120 = verf.f32.pop %v1088
      %v1121 = verf.f32.pop %v1089
      %v1122 = verf.f32.pop %v1090
      %v1123 = verf.f32.pop %v1091
      %v1124 = verf.f32.pop %v1092
      %v1125 = vadd.f32 %v1093, 1.0
      %v1126 = vadd.f32 %v1094, 1.0
      %v1127 = vadd.f32 %v1095, 1.0
      %v1128 = vadd.f32 %v1096, 1.0
      %v1129 = vadd.f32 %v1097, 1.0
      %v1130 = vadd.f32 %v1098, 1.0
      %v1131 = vadd.f32 %v1099, 1.0
      %v1132 = vadd.f32 %v1100, 1.0
      %v1133 = vadd.f32 %v1101, 1.0
      %v1134 = vadd.f32 %v1102, 1.0
      %v1135 = vadd.f32 %v1103, 1.0
      %v1136 = vadd.f32 %v1104, 1.0
      %v1137 = vadd.f32 %v1105, 1.0
      %v1138 = vadd.f32 %v1106, 1.0
      %v1139 = vadd.f32 %v1107, 1.0
      %v1140 = vadd.f32 %v1108, 1.0
      %v1141 = vadd.f32 %v1109, 1.0
      %v1142 = vadd.f32 %v1110, 1.0
      %v1143 = vadd.f32 %v1111, 1.0
      %v1144 = vadd.f32 %v1112, 1.0
      %v1145 = vadd.f32 %v1113, 1.0
      %v1146 = vadd.f32 %v1114, 1.0
      %v1147 = vadd.f32 %v1115, 1.0
      %v1148 = vadd.f32 %v1116, 1.0
      %v1149 = vadd.f32 %v1117, 1.0
      %v1150 = vadd.f32 %v1118, 1.0
      %v1151 = vadd.f32 %v1119, 1.0
      %v1152 = vadd.f32 %v1120, 1.0
      %v1153 = vadd.f32 %v1121, 1.0
      %v1154 = vadd.f32 %v1122, 1.0
      %v1155 = vadd.f32 %v1123, 1.0
      %v1156 = vadd.f32 %v1124, 1.0
      %v1157 = vmul.f32 %v1029, %v1125
      %v1158 = vmul.f32 %v1030, %v1126
      %v1159 = vmul.f32 %v1031, %v1127
      %v1160 = vmul.f32 %v1032, %v1128
      %v1161 = vmul.f32 %v1033, %v1129
      %v1162 = vmul.f32 %v1034, %v1130
      %v1163 = vmul.f32 %v1035, %v1131
      %v1164 = vmul.f32 %v1036, %v1132
      %v1165 = vmul.f32 %v1037, %v1133
      %v1166 = vmul.f32 %v1038, %v1134
      %v1167 = vmul.f32 %v1039, %v1135
      %v1168 = vmul.f32 %v1040, %v1136
      %v1169 = vmul.f32 %v1041, %v1137
      %v1170 = vmul.f32 %v1042, %v1138
      %v1171 = vmul.f32 %v1043, %v1139
      %v1172 = vmul.f32 %v1044, %v1140
      %v1173 = vmul.f32 %v1045, %v1141
      %v1174 = vmul.f32 %v1046, %v1142
      %v1175 = vmul.f32 %v1047, %v1143
      %v1176 = vmul.f32 %v1048, %v1144
      %v1177 = vmul.f32 %v1049, %v1145
      %v1178 = vmul.f32 %v1050, %v1146
      %v1179 = vmul.f32 %v1051, %v1147
      %v1180 = vmul.f32 %v1052, %v1148
      %v1181 = vmul.f32 %v1053, %v1149
      %v1182 = vmul.f32 %v1054, %v1150
      %v1183 = vmul.f32 %v1055, %v1151
      %v1184 = vmul.f32 %v1056, %v1152
      %v1185 = vmul.f32 %v1057, %v1153
      %v1186 = vmul.f32 %v1058, %v1154
      %v1187 = vmul.f32 %v1059, %v1155
      %v1188 = vmul.f32 %v1060, %v1156
      %vm1189 = vcmask 64512
      %1190 = vst.msk [vmem:[%s224] sm:$0xff] %vm1189, %v1157
      %1191 = vst.msk [vmem:[%s224 + $0x8] sm:$0xff] %vm1189, %v1158
      %1192 = vst.msk [vmem:[%s224 + $0x10] sm:$0xff] %vm1189, %v1159
      %1193 = vst.msk [vmem:[%s224 + $0x18] sm:$0xff] %vm1189, %v1160
      %1194 = vst.msk [vmem:[%s224 + $0x20] sm:$0xff] %vm1189, %v1161
      %1195 = vst.msk [vmem:[%s224 + $0x28] sm:$0xff] %vm1189, %v1162
      %1196 = vst.msk [vmem:[%s224 + $0x30] sm:$0xff] %vm1189, %v1163
      %1197 = vst.msk [vmem:[%s224 + $0x38] sm:$0xff] %vm1189, %v1164
      %1198 = vst.msk [vmem:[%s224 + $0x40] sm:$0xff] %vm1189, %v1165
      %1199 = vst.msk [vmem:[%s224 + $0x48] sm:$0xff] %vm1189, %v1166
      %1200 = vst.msk [vmem:[%s224 + $0x50] sm:$0xff] %vm1189, %v1167
      %1201 = vst.msk [vmem:[%s224 + $0x58] sm:$0xff] %vm1189, %v1168
      %1202 = vst.msk [vmem:[%s224 + $0x60] sm:$0xff] %vm1189, %v1169
      %1203 = vst.msk [vmem:[%s224 + $0x68] sm:$0xff] %vm1189, %v1170
      %1204 = vst.msk [vmem:[%s224 + $0x70] sm:$0xff] %vm1189, %v1171
      %1205 = vst.msk [vmem:[%s224 + $0x78] sm:$0xff] %vm1189, %v1172
      %1206 = vst.msk [vmem:[%s224 + $0x80] sm:$0xff] %vm1189, %v1173
      %1207 = vst.msk [vmem:[%s224 + $0x88] sm:$0xff] %vm1189, %v1174
      %1208 = vst.msk [vmem:[%s224 + $0x90] sm:$0xff] %vm1189, %v1175
      %1209 = vst.msk [vmem:[%s224 + $0x98] sm:$0xff] %vm1189, %v1176
      %1210 = vst.msk [vmem:[%s224 + $0xa0] sm:$0xff] %vm1189, %v1177
      %1211 = vst.msk [vmem:[%s224 + $0xa8] sm:$0xff] %vm1189, %v1178
      %1212 = vst.msk [vmem:[%s224 + $0xb0] sm:$0xff] %vm1189, %v1179
      %1213 = vst.msk [vmem:[%s224 + $0xb8] sm:$0xff] %vm1189, %v1180
      %1214 = vst.msk [vmem:[%s224 + $0xc0] sm:$0xff] %vm1189, %v1181
      %1215 = vst.msk [vmem:[%s224 + $0xc8] sm:$0xff] %vm1189, %v1182
      %1216 = vst.msk [vmem:[%s224 + $0xd0] sm:$0xff] %vm1189, %v1183
      %1217 = vst.msk [vmem:[%s224 + $0xd8] sm:$0xff] %vm1189, %v1184
      %1218 = vst.msk [vmem:[%s224 + $0xe0] sm:$0xff] %vm1189, %v1185
      %1219 = vst.msk [vmem:[%s224 + $0xe8] sm:$0xff] %vm1189, %v1186
      %1220 = vst.msk [vmem:[%s224 + $0xf0] sm:$0xff] %vm1189, %v1187
      %1221 = vst.msk [vmem:[%s224 + $0xf8] sm:$0xff] %vm1189, %v1188
      %p1222 = scmp.lt.s32.totalorder %s19, 1
      %s1223 = scalar_select %p1222, %s19, 1
      %p1224 = scmp.lt.s32.totalorder %s18, 0
      %s1225 = scalar_select %p1224, %s18, 0
      %s1226 = smul.addr %s1223, 32
      %s1227 = sadd.s32 %s1225, %s1226
      %s1228 = smul.addr %s1227, 8
      %s1229 = scalar_lea.vmem %s3, %s1228
      // Predicated region
      $region33: #{cba_forward.1} parent=31 // pred_check
        %p1230 = pneg %p124
      $region34: #{cba_forward.1} parent=31 // pred_check_branch
        %1232 = sbr.rel (%p1230) target = $region36
      $region35: #{cba_forward.1} parent=31 // pred_region
        _
      $region36: #{cba_forward.1} parent=31 // pred_fallthru
        _
    $region32: #{cba_forward.1} parent=5 // pred_fallthru
      _
    %p1233 = scmp.le.s32.totalorder 2, %s9
    // Predicated region
    $region37: #{cba_forward.1} parent=5 // pred_check
      %p1234 = pneg %p1233
    $region38: #{cba_forward.1} parent=5 // pred_check_branch
      %1236 = sbr.rel (%p1234) target = $region40
    $region39: #{cba_forward.1} parent=5 // pred_region
      %s1237 = ssub.s32 %s9, 2
      // Predicated region
      $region41: #{cba_forward.1} parent=39 // pred_check
        %p1238 = pneg %p130
      $region42: #{cba_forward.1} parent=39 // pred_check_branch
        %1240 = sbr.rel (%p1238) target = $region44
      $region43: #{cba_forward.1} parent=39 // pred_region
        %p1241 = scmp.lt.s32.totalorder %s21, 1
        %s1242 = scalar_select %p1241, %s21, 1
        %p1243 = scmp.lt.s32.totalorder %s20, 0
        %s1244 = scalar_select %p1243, %s20, 0
        %s1245 = smul.addr %s1242, 32
        %s1246 = sadd.s32 %s1244, %s1245
        %s1247 = smul.addr %s1246, 8
        %s1248 = scalar_lea.vmem %s3, %s1247
      $region44: #{cba_forward.1} parent=39 // pred_fallthru
        _
    $region40: #{cba_forward.1} parent=5 // pred_fallthru
      _
  $region6: #{cba_forward.1} parent=0 // loop_footer
    %s13 = sadd.s32 1, %s9
  $region7: #{cba_forward.1} parent=0 // loop_footer_branch
    %8 = sbr.rel target = $region3
  $region8: #{cba_forward.1} parent=0 // loop_exit
    _

</llo_original>
